<compile_context>
chip_gen: v7x
topology: tpu7x:2x2x1
jax: 0.10.0
libtpu: 0.0.40
codegen_flags: <defaults>
</compile_context>

<pallas_src>
import math
import functools

import jax
import jax.numpy as jnp
from jax.experimental import pallas as pl
from jax.experimental.pallas import tpu as pltpu


# ----------------------------------------------------------------------------
# helpers
# ----------------------------------------------------------------------------
def _pick_tile(dim, preferred, mult):
    """Largest multiple of `mult` that divides `dim` and is <= preferred,
    else the full dim (full-dim blocks are exempt from the (8,128) rule)."""
    if dim <= preferred:
        return dim
    t = preferred - (preferred % mult)
    while t >= mult:
        if dim % t == 0:
            return t
        t -= mult
    return dim


def _vmem_limit(nbytes, lo=32 << 20, hi=64 << 20):
    """Clamp an estimated VMEM need to a sane scoped-VMEM limit (<= v7x physical)."""
    return int(min(max(nbytes, lo), hi))


# ----------------------------------------------------------------------------
# Tiled matmul kernel (in_linear / pooler):  o = act(x @ w + b)
# ----------------------------------------------------------------------------
def _matmul_kernel(x_ref, w_ref, b_ref, o_ref, acc_ref, *, act):
    @pl.when(pl.program_id(2) == 0)
    def _():
        acc_ref[...] = jnp.zeros_like(acc_ref)

    # weights arrive pre-cast bf16; only the activation block is cast in-kernel.
    acc_ref[...] += jnp.dot(x_ref[...].astype(jnp.bfloat16), w_ref[...],
                            preferred_element_type=jnp.float32)

    @pl.when(pl.program_id(2) == pl.num_programs(2) - 1)
    def _():
        y = acc_ref[...] + b_ref[...]
        if act == "gelu":
            # TODO(synk): HF BERT "gelu" is erf-based; tanh approximation used here.
            y = jax.nn.gelu(y, approximate=True)
        elif act == "tanh":
            y = jnp.tanh(y)
        o_ref[...] = y.astype(o_ref.dtype)


def matmul(x, w_bf16, b, act=None):
    """x: [M, K] f32, w_bf16: [K, N] bf16, b: [N] f32 -> [M, N] f32."""
    M, K = x.shape
    _, N = w_bf16.shape
    tm = _pick_tile(M, 512, 8)
    tk = _pick_tile(K, 1024, 128)
    tn = _pick_tile(N, 512, 128)
    grid = (M // tm, N // tn, K // tk)
    tile_bytes = tm * tk * 4 + tk * tn * 2 + 2 * tm * tn * 4 + tn * 4
    return pl.pallas_call(
        functools.partial(_matmul_kernel, act=act),
        out_shape=jax.ShapeDtypeStruct((M, N), x.dtype),
        grid=grid,
        in_specs=[
            pl.BlockSpec((tm, tk), lambda i, j, k: (i, k)),
            pl.BlockSpec((tk, tn), lambda i, j, k: (k, j)),
            pl.BlockSpec((1, tn), lambda i, j, k: (0, j)),
        ],
        out_specs=pl.BlockSpec((tm, tn), lambda i, j, k: (i, j)),
        scratch_shapes=[pltpu.VMEM((tm, tn), jnp.float32)],
        compiler_params=pltpu.CompilerParams(
            dimension_semantics=("parallel", "parallel", "arbitrary"),
            vmem_limit_bytes=_vmem_limit(3 * tile_bytes, lo=16 << 20)),
        cost_estimate=pl.CostEstimate(
            flops=2 * M * N * K, transcendentals=0,
            bytes_accessed=4 * M * K + 2 * K * N + 4 * M * N),
    )(x, w_bf16, b.reshape(1, N))


# ----------------------------------------------------------------------------
# Embedding LayerNorm kernel: o = LN(x + pos + type0) * gamma + beta
# (multiple batches per grid step; pos/type broadcast done in-kernel)
# ----------------------------------------------------------------------------
def _embed_ln_kernel(x_ref, pos_ref, tt_ref, g_ref, b_ref, o_ref, *, bb, S, eps):
    H = x_ref.shape[-1]
    h = x_ref[...].reshape(bb, S, H) + pos_ref[...] + tt_ref[...]
    mu = jnp.mean(h, axis=-1, keepdims=True)
    var = jnp.mean((h - mu) ** 2, axis=-1, keepdims=True)
    y = (h - mu) * jax.lax.rsqrt(var + eps) * g_ref[...] + b_ref[...]
    o_ref[...] = y.reshape(bb * S, H).astype(o_ref.dtype)


def embed_layernorm(x, pos, tt, gamma, beta, *, B, S, eps=1e-12):
    M, H = x.shape
    # largest divisor of B whose [bb*S, H] f32 block stays under ~2 MiB
    bb = B
    while bb > 1 and (B % bb != 0 or bb * S * H * 4 > (2 << 20)):
        bb -= 1
    return pl.pallas_call(
        functools.partial(_embed_ln_kernel, bb=bb, S=S, eps=eps),
        out_shape=jax.ShapeDtypeStruct((M, H), x.dtype),
        grid=(B // bb,),
        in_specs=[
            pl.BlockSpec((bb * S, H), lambda i: (i, 0)),
            pl.BlockSpec((S, H), lambda i: (0, 0)),
            pl.BlockSpec((1, H), lambda i: (0, 0)),
            pl.BlockSpec((1, H), lambda i: (0, 0)),
            pl.BlockSpec((1, H), lambda i: (0, 0)),
        ],
        out_specs=pl.BlockSpec((bb * S, H), lambda i: (i, 0)),
        compiler_params=pltpu.CompilerParams(dimension_semantics=("parallel",)),
    )(x, pos, tt, gamma.reshape(1, H), beta.reshape(1, H))


# ----------------------------------------------------------------------------
# Fused BERT encoder layer (attention + FFN) — one pallas_call per layer
# ----------------------------------------------------------------------------
def _encoder_layer_kernel(x_ref, wqkv_ref, bqkv_ref, wo_ref, bo_ref,
                          g1_ref, b1_ref, wi_ref, bi_ref, wf_ref, bf_ref,
                          g2_ref, b2_ref, *rest, nh, scale, eps, has_mask):
    if has_mask:
        m_ref, o_ref, qkv_scr, ctx_scr = rest
    else:
        o_ref, qkv_scr, ctx_scr = rest

    x = x_ref[...]                                   # [S, H] f32
    S, H = x.shape
    dh = H // nh

    # ---- fused QKV projection (bf16 weights streamed, f32 accumulation) -----
    qkv_scr[...] = (jnp.dot(x.astype(jnp.bfloat16), wqkv_ref[...],
                            preferred_element_type=jnp.float32) + bqkv_ref[...])

    if has_mask:
        mask = m_ref[0]                              # [1, S] additive mask

    # ---- per-head attention, context written into head-slot columns ---------
    # Static Python loop with the big tensors held in VMEM scratch refs: each
    # iteration only keeps one head's tiles live (no vreg-carried [S,H]
    # accumulator), and static slice starts keep Mosaic ref slices cheap.
    for h in range(nh):
        lo = h * dh
        qh = qkv_scr[:, lo:lo + dh].astype(jnp.bfloat16)
        kh = qkv_scr[:, H + lo:H + lo + dh].astype(jnp.bfloat16)
        vh = qkv_scr[:, 2 * H + lo:2 * H + lo + dh].astype(jnp.bfloat16)
        s = jax.lax.dot_general(qh, kh, (((1,), (1,)), ((), ())),
                                preferred_element_type=jnp.float32) * scale
        if has_mask:
            s = s + mask
        s = s - jnp.max(s, axis=-1, keepdims=True)
        p = jnp.exp(s)
        p = p * pl.reciprocal(jnp.sum(p, axis=-1, keepdims=True), approx=True)
        ctx_scr[:, lo:lo + dh] = jnp.dot(p.astype(jnp.bfloat16), vh,
                                         preferred_element_type=jnp.float32)

    # ---- single full-width output projection + residual + LayerNorm ---------
    attn = (jnp.dot(ctx_scr[...].astype(jnp.bfloat16), wo_ref[...],
                    preferred_element_type=jnp.float32) + bo_ref[...])
    h1 = attn + x
    mu = jnp.mean(h1, axis=-1, keepdims=True)
    var = jnp.mean((h1 - mu) ** 2, axis=-1, keepdims=True)
    h1 = (h1 - mu) * jax.lax.rsqrt(var + eps) * g1_ref[...] + b1_ref[...]

    # ---- FFN: up-proj + GELU + down-proj, intermediate never leaves VMEM -----
    # TODO(synk): HF BERT "gelu" is erf-based; tanh approximation used here.
    inter = (jnp.dot(h1.astype(jnp.bfloat16), wi_ref[...],
                     preferred_element_type=jnp.float32) + bi_ref[...])
    inter = jax.nn.gelu(inter, approximate=True)
    ffn = (jnp.dot(inter.astype(jnp.bfloat16), wf_ref[...],
                   preferred_element_type=jnp.float32) + bf_ref[...])
    h2 = ffn + h1
    mu = jnp.mean(h2, axis=-1, keepdims=True)
    var = jnp.mean((h2 - mu) ** 2, axis=-1, keepdims=True)
    y = (h2 - mu) * jax.lax.rsqrt(var + eps) * g2_ref[...] + b2_ref[...]
    o_ref[...] = y.astype(o_ref.dtype)


def encoder_layer(x, layer, ext_mask, *, B, S, nh, inter, eps=1e-12):
    M, H = x.shape
    I = inter
    dh = H // nh
    scale = 1.0 / math.sqrt(dh)
    has_mask = ext_mask is not None

    in_specs = [
        pl.BlockSpec((S, H), lambda b: (b, 0)),
        pl.BlockSpec((H, 3 * H), lambda b: (0, 0)),
        pl.BlockSpec((1, 3 * H), lambda b: (0, 0)),
        pl.BlockSpec((H, H), lambda b: (0, 0)),
        pl.BlockSpec((1, H), lambda b: (0, 0)),
        pl.BlockSpec((1, H), lambda b: (0, 0)),
        pl.BlockSpec((1, H), lambda b: (0, 0)),
        pl.BlockSpec((H, I), lambda b: (0, 0)),
        pl.BlockSpec((1, I), lambda b: (0, 0)),
        pl.BlockSpec((I, H), lambda b: (0, 0)),
        pl.BlockSpec((1, H), lambda b: (0, 0)),
        pl.BlockSpec((1, H), lambda b: (0, 0)),
        pl.BlockSpec((1, H), lambda b: (0, 0)),
    ]
    inputs = [x,
              layer["qkv_w"], layer["qkv_b"].reshape(1, 3 * H),
              layer["o_w"], layer["o_b"].reshape(1, H),
              layer["attn_ln_g"].reshape(1, H), layer["attn_ln_b"].reshape(1, H),
              layer["i_w"], layer["i_b"].reshape(1, I),
              layer["f_w"], layer["f_b"].reshape(1, H),
              layer["ffn_ln_g"].reshape(1, H), layer["ffn_ln_b"].reshape(1, H)]
    if has_mask:
        in_specs.append(pl.BlockSpec((1, 1, S), lambda b: (b, 0, 0)))
        inputs.append(ext_mask)

    # VMEM budget: bf16 weight blocks + f32 activation blocks (double-buffered)
    # + f32 scratches + margin.
    w_bytes = (3 * H * H + H * H + 2 * H * I) * 2
    act_bytes = 2 * S * H * 4 + (S * 4 if has_mask else 0)
    scr_bytes = (3 * S * H + S * H) * 4
    need = 2 * (w_bytes + act_bytes) + scr_bytes + (4 << 20)

    flops = B * (2 * S * H * 3 * H + 4 * S * S * H + 2 * S * H * H + 4 * S * H * I)
    return pl.pallas_call(
        functools.partial(_encoder_layer_kernel, nh=nh, scale=scale, eps=eps,
                          has_mask=has_mask),
        out_shape=jax.ShapeDtypeStruct((M, H), x.dtype),
        grid=(B,),
        in_specs=in_specs,
        out_specs=pl.BlockSpec((S, H), lambda b: (b, 0)),
        scratch_shapes=[pltpu.VMEM((S, 3 * H), jnp.float32),   # qkv
                        pltpu.VMEM((S, H), jnp.float32)],      # per-head contexts
        compiler_params=pltpu.CompilerParams(
            dimension_semantics=("parallel",),
            vmem_limit_bytes=_vmem_limit(need)),
        cost_estimate=pl.CostEstimate(
            flops=flops,
            transcendentals=B * (nh * S * S + S * I),
            bytes_accessed=B * 2 * S * H * 4 + w_bytes),
    )(*inputs)


# ----------------------------------------------------------------------------
# Parameter construction (deterministic, synthetic)
# ----------------------------------------------------------------------------
CLASSES = ["Bar", "Position", "Pitch", "Duration"]


def build_vocabs():
    """Build e2w/w2e like the module expects (regular tokens + PAD + MASK)."""
    sizes = {"Bar": 4, "Position": 16, "Pitch": 24, "Duration": 16}
    e2w, w2e = {}, {}
    for cls in CLASSES:
        toks = [f"{cls} {i}" for i in range(sizes[cls])]
        toks += [f"{cls} <PAD>", f"{cls} <MASK>"]
        e2w[cls] = {t: i for i, t in enumerate(toks)}
        w2e[cls] = {i: t for i, t in enumerate(toks)}
    return e2w, w2e


def init_params(key, cfg):
    def nrm(k, shape, scale=0.02, dtype=jnp.float32):
        return (jax.random.normal(k, shape, jnp.float32) * scale).astype(dtype)

    H, I = cfg["hidden"], cfg["inter"]
    keys = jax.random.split(key, 64)
    ki = iter(keys)

    # MXU-facing weights are stored/streamed as bf16 (cast once here);
    # biases / LayerNorm params / embedding tables stay f32.
    params = {
        "word_emb": [nrm(next(ki), (cfg["n_tokens"][i], cfg["emb_sizes"][i]))
                     for i in range(4)],
        "in_w": nrm(next(ki), (sum(cfg["emb_sizes"]), H), dtype=jnp.bfloat16),
        "in_b": jnp.zeros((H,), jnp.float32),
        "pos_emb": nrm(next(ki), (cfg["max_pos"], H)),
        "type_emb": nrm(next(ki), (cfg["type_vocab"], H)),
        "emb_ln_g": jnp.ones((H,), jnp.float32),
        "emb_ln_b": jnp.zeros((H,), jnp.float32),
        "pool_w": nrm(next(ki), (H, H), dtype=jnp.bfloat16),
        "pool_b": jnp.zeros((H,), jnp.float32),
        "layers": [],
    }
    for _ in range(cfg["layers"]):
        layer = {
            # q/k/v weights fused into one [H, 3H] bf16 matrix
            "qkv_w": nrm(next(ki), (H, 3 * H), dtype=jnp.bfloat16),
            "qkv_b": jnp.zeros((3 * H,), jnp.float32),
            "o_w": nrm(next(ki), (H, H), dtype=jnp.bfloat16),
            "o_b": jnp.zeros((H,), jnp.float32),
            "attn_ln_g": jnp.ones((H,), jnp.float32),
            "attn_ln_b": jnp.zeros((H,), jnp.float32),
            "i_w": nrm(next(ki), (H, I), dtype=jnp.bfloat16),
            "i_b": jnp.zeros((I,), jnp.float32),
            "f_w": nrm(next(ki), (I, H), dtype=jnp.bfloat16),
            "f_b": jnp.zeros((H,), jnp.float32),
            "ffn_ln_g": jnp.ones((H,), jnp.float32),
            "ffn_ln_b": jnp.zeros((H,), jnp.float32),
        }
        params["layers"].append(layer)
    return params


# ----------------------------------------------------------------------------
# MidiBert forward
# ----------------------------------------------------------------------------
def midibert_forward(params, cfg, input_ids, attn_mask=None,
                     output_hidden_states=True):
    B, S, _ = input_ids.shape
    H = cfg["hidden"]
    nh = cfg["heads"]

    # --- per-class word embeddings (Embeddings: lut(x) * sqrt(d_model)) -------
    embs = []
    for i in range(4):
        e = jnp.take(params["word_emb"][i], input_ids[..., i], axis=0)
        embs.append(e * math.sqrt(cfg["emb_sizes"][i]))
    embs = jnp.concatenate(embs, axis=-1).reshape(B * S, -1)   # [B*S, sum(emb)]

    # --- in_linear projection to d_model (tiled Pallas matmul, bf16 weights) --
    x = matmul(embs, params["in_w"], params["in_b"])           # [B*S, H] f32

    # --- BertEmbeddings: + position + token_type(0), LayerNorm (fused) --------
    x = embed_layernorm(x, params["pos_emb"][:S], params["type_emb"][0:1],
                        params["emb_ln_g"], params["emb_ln_b"], B=B, S=S)

    hidden_states = [x.reshape(B, S, H)]

    # --- extended attention mask (HF convention); compile-time skip if None ---
    ext_mask = None
    if attn_mask is not None:
        ext_mask = ((1.0 - attn_mask.astype(jnp.float32)) * -10000.0
                    ).reshape(B, 1, S)

    # --- BERT encoder layers (one fused pallas_call per layer) ----------------
    for layer in params["layers"]:
        x = encoder_layer(x, layer, ext_mask, B=B, S=S, nh=nh, inter=cfg["inter"])
        hidden_states.append(x.reshape(B, S, H))

    last = x.reshape(B, S, H)
    pooled = matmul(last[:, 0, :], params["pool_w"], params["pool_b"], act="tanh")

    out = {"last_hidden_state": last, "pooler_output": pooled}
    if output_hidden_states:
        out["hidden_states"] = tuple(hidden_states)
    return out


# ----------------------------------------------------------------------------
# Demo
# ----------------------------------------------------------------------------
if __name__ == "__main__":
    e2w, w2e = build_vocabs()
    cfg = {
        "n_tokens": [len(e2w[c]) for c in CLASSES],   # includes PAD / MASK
        "emb_sizes": [256, 256, 256, 256],            # as in the module
        "hidden": 64,
        "layers": 2,
        "heads": 4,
        "inter": 128,
        "max_pos": 32,
        "type_vocab": 2,
    }

    key = jax.random.PRNGKey(0)
    k_param, k_ids = jax.random.split(key)
    params = init_params(k_param, cfg)

    B, S = 2, 8
    id_keys = jax.random.split(k_ids, 4)
    cols = [jax.random.randint(id_keys[i], (B, S), 0, cfg["n_tokens"][i],
                               dtype=jnp.int32) for i in range(4)]
    input_ids = jnp.stack(cols, axis=-1)              # [B, S, 4]
    attn_mask = jnp.ones((B, S), jnp.float32)

    out = midibert_forward(params, cfg, input_ids, attn_mask,
                           output_hidden_states=True)
    jax.block_until_ready(out["last_hidden_state"])
    jax.block_until_ready(out["pooler_output"])

    assert out["last_hidden_state"].shape == (B, S, cfg["hidden"])
    assert out["pooler_output"].shape == (B, cfg["hidden"])
    assert len(out["hidden_states"]) == cfg["layers"] + 1
    assert bool(jnp.all(jnp.isfinite(out["last_hidden_state"])))
    print("KERNEL_OK")
</pallas_src>

<mosaic_0001>
module attributes {stable_mosaic.version = 11 : i64} {
  func.func @_matmul_kernel(%arg0: i32, %arg1: i32, %arg2: i32, %arg3: memref<16x1024xf32, #tpu.memory_space<vmem>>, %arg4: memref<1024x64xbf16, #tpu.memory_space<vmem>>, %arg5: memref<1x64xf32, #tpu.memory_space<vmem>>, %arg6: memref<16x64xf32, #tpu.memory_space<vmem>>, %arg7: memref<16x64xf32, #tpu.memory_space<vmem>>) attributes {dimension_semantics = [#tpu.dimension_semantics<parallel>, #tpu.dimension_semantics<parallel>, #tpu.dimension_semantics<arbitrary>], iteration_bounds = array<i64: 1, 1, 1>, scalar_prefetch = 0 : i64, scratch_operands = 1 : i64, tpu.core_type = #tpu.core_type<tc>, window_params = [{transform_indices = @transform_0, window_bounds = array<i64: 16, 1024>}, {transform_indices = @transform_1, window_bounds = array<i64: 1024, 64>}, {transform_indices = @transform_2, window_bounds = array<i64: 1, 64>}, {transform_indices = @transform_3, window_bounds = array<i64: 16, 64>}]} {
    %c0_i32 = arith.constant 0 : i32
    %0 = arith.cmpi eq, %arg2, %c0_i32 : i32
    %1 = arith.extui %0 : i1 to i32
    %c0_i32_0 = arith.constant 0 : i32
    %2 = arith.cmpi ne, %1, %c0_i32_0 : i32
    scf.if %2 {
      %cst_10 = arith.constant 0.000000e+00 : f32
      %13 = vector.broadcast %cst_10 : f32 to vector<16x64xf32>
      %c0_11 = arith.constant 0 : index
      %c0_12 = arith.constant 0 : index
      %14 = vector.load %arg7[%c0_11, %c0_12] : memref<16x64xf32, #tpu.memory_space<vmem>>, vector<16x64xf32>
      tpu.vector_store %arg7[%c0_11, %c0_12], %13 {strides = array<i32>} : memref<16x64xf32, #tpu.memory_space<vmem>>, vector<16x64xf32>,
    } else {
    }
    %c0 = arith.constant 0 : index
    %c0_1 = arith.constant 0 : index
    %3 = vector.load %arg7[%c0, %c0_1] : memref<16x64xf32, #tpu.memory_space<vmem>>, vector<16x64xf32>
    %c0_2 = arith.constant 0 : index
    %c0_3 = arith.constant 0 : index
    %4 = vector.load %arg3[%c0_2, %c0_3] : memref<16x1024xf32, #tpu.memory_space<vmem>>, vector<16x1024xf32>
    %5 = arith.truncf %4 : vector<16x1024xf32> to vector<16x1024xbf16>
    %c0_4 = arith.constant 0 : index
    %c0_5 = arith.constant 0 : index
    %6 = vector.load %arg4[%c0_4, %c0_5] : memref<1024x64xbf16, #tpu.memory_space<vmem>>, vector<1024x64xbf16>
    %cst = arith.constant dense<0.000000e+00> : vector<16x64xf32>
    %7 = tpu.matmul %5, %6, %cst {dimension_numbers = #tpu.dot_dimension_numbers<[1], [0], [0], [1], [0, 0, 1, 1], [], []>} : vector<16x1024xbf16>, vector<1024x64xbf16>, vector<16x64xf32> -> vector<16x64xf32>
    %8 = arith.addf %3, %7 : vector<16x64xf32>
    %c0_6 = arith.constant 0 : index
    %c0_7 = arith.constant 0 : index
    %9 = vector.load %arg7[%c0_6, %c0_7] : memref<16x64xf32, #tpu.memory_space<vmem>>, vector<16x64xf32>
    tpu.vector_store %arg7[%c0_6, %c0_7], %8 {strides = array<i32>} : memref<16x64xf32, #tpu.memory_space<vmem>>, vector<16x64xf32>,
    %c0_i32_8 = arith.constant 0 : i32
    %10 = arith.cmpi eq, %arg2, %c0_i32_8 : i32
    %11 = arith.extui %10 : i1 to i32
    %c0_i32_9 = arith.constant 0 : i32
    %12 = arith.cmpi ne, %11, %c0_i32_9 : i32
    scf.if %12 {
      %c0_10 = arith.constant 0 : index
      %c0_11 = arith.constant 0 : index
      %13 = vector.load %arg7[%c0_10, %c0_11] : memref<16x64xf32, #tpu.memory_space<vmem>>, vector<16x64xf32>
      %c0_12 = arith.constant 0 : index
      %c0_13 = arith.constant 0 : index
      %14 = vector.load %arg5[%c0_12, %c0_13] : memref<1x64xf32, #tpu.memory_space<vmem>>, vector<1x64xf32>
      %15 = vector.broadcast %14 : vector<1x64xf32> to vector<16x64xf32>
      %16 = arith.addf %13, %15 : vector<16x64xf32>
      %c0_14 = arith.constant 0 : index
      %c0_15 = arith.constant 0 : index
      %17 = vector.load %arg6[%c0_14, %c0_15] : memref<16x64xf32, #tpu.memory_space<vmem>>, vector<16x64xf32>
      tpu.vector_store %arg6[%c0_14, %c0_15], %16 {strides = array<i32>} : memref<16x64xf32, #tpu.memory_space<vmem>>, vector<16x64xf32>,
    } else {
    }
    return
  }
  func.func @transform_0(%arg0: i32, %arg1: i32, %arg2: i32) -> (i32, i32) {
    %c0_i32 = arith.constant 0 : i32
    return %arg0, %arg2 : i32, i32
  }
  func.func @transform_1(%arg0: i32, %arg1: i32, %arg2: i32) -> (i32, i32) {
    %c0_i32 = arith.constant 0 : i32
    return %arg2, %arg1 : i32, i32
  }
  func.func @transform_2(%arg0: i32, %arg1: i32, %arg2: i32) -> (i32, i32) {
    %c0_i32 = arith.constant 0 : i32
    %c0_i32_0 = arith.constant 0 : i32
    return %c0_i32, %arg1 : i32, i32
  }
  func.func @transform_3(%arg0: i32, %arg1: i32, %arg2: i32) -> (i32, i32) {
    %c0_i32 = arith.constant 0 : i32
    return %arg0, %arg1 : i32, i32
  }
}

</mosaic_0001>

<llo_original>
// kernel: tpu_custom_call.1
$region0: #{tpu_custom_call.1}
  #allocation0 [shape = 'u32[]', space=smem, size = 0x4, offset = 0x4, fixed_abs, tag = 'smem constant byte address 0x4 - core index']
  #allocation1 [shape = 'u32[144,128]{1,0:T(1,128)}', space=vmem, size = 0x12000, scoped, tag = 'internal scratch']
  #allocation2 [shape = 'f32[16,64]{1,0:T(8,128)}', space=vmem, size = 0x2000, scoped, tag = 'scratch operand']
  %s0 = inlined_call_operand.vmem [shape: f32[16,1024], index: 0, kind: input, shape index: {}]
  %s1 = inlined_call_operand.vmem [shape: bf16[1024,64], index: 1, kind: input, shape index: {}]
  %s2 = inlined_call_operand.vmem [shape: f32[1,64], index: 2, kind: input, shape index: {}]
  %s3 = inlined_call_operand.hbm [shape: f32[16,64], index: 3, kind: output, shape index: {}]
  %s4 = sld [smem:[#allocation0]]
  $region30: #{tpu_custom_call.1} parent=0
    _
  %s6 = ssub.s32 1, %s4
  %s7 = scalar_select 0, %s6, %s4
  $region1: #{tpu_custom_call.1} parent=0
    #allocation3 [shape = 'u8[8192]{0}', space=vmem, size = 0x2000, scoped, tag = 'output window, operand 0, single buffered']
    #allocation4 [shape = 's32[1]{0}', space=sflag, size = 0x4, scoped, tag = 'scoped memory for tpu_custom_call.1']
    %8 = vsyncpa [#allocation4], 0
    // Predicated region
    $region2: #{tpu_custom_call.1} parent=1 // pred_check
      _
    $region3: #{tpu_custom_call.1} parent=1 // pred_check_branch
      %10 = sbr.rel (0) target = $region5
    $region4: #{tpu_custom_call.1} parent=1 // pred_region
      _
    $region5: #{tpu_custom_call.1} parent=1 // pred_fallthru
      _
    // Predicated region
    $region6: #{tpu_custom_call.1} parent=1 // pred_check
      _
    $region7: #{tpu_custom_call.1} parent=1 // pred_check_branch
      %12 = sbr.rel (0) target = $region9
    $region8: #{tpu_custom_call.1} parent=1 // pred_region
      _
    $region9: #{tpu_custom_call.1} parent=1 // pred_fallthru
      _
    // Predicated region
    $region10: #{tpu_custom_call.1} parent=1 // pred_check
      _
    $region11: #{tpu_custom_call.1} parent=1 // pred_check_branch
      %14 = sbr.rel (0) target = $region13
    $region12: #{tpu_custom_call.1} parent=1 // pred_region
      _
    $region13: #{tpu_custom_call.1} parent=1 // pred_fallthru
      _
    %p16 = scmp.eq.s32.totalorder 0, 0
    // Predicated region
    $region14: #{tpu_custom_call.1} parent=1 // pred_check
      %p17 = pneg %p16
    $region15: #{tpu_custom_call.1} parent=1 // pred_check_branch
      %19 = sbr.rel (%p17) target = $region17
    $region16: #{tpu_custom_call.1} parent=1 // pred_region
      %vm20 = vcmask 523264
      %21 = vst.msk [vmem:[#allocation2] sm:$0xff] %vm20, 0.0
      %22 = vst.msk [vmem:[#allocation2 + $0x8] sm:$0xff] %vm20, 0.0
    $region17: #{tpu_custom_call.1} parent=1 // pred_fallthru
      _
    %v23 = vld [vmem:[#allocation2] sm:$0xff]
    %v24 = vld [vmem:[#allocation2 + $0x8] sm:$0xff]
    %v25 = vld [vmem:[%s0] sm:$0xff]
    %v26 = vld [vmem:[%s0 + $0x8] sm:$0xff]
    %v27 = vld [vmem:[%s0 + $0x10] sm:$0xff]
    %v28 = vld [vmem:[%s0 + $0x18] sm:$0xff]
    %v29 = vld [vmem:[%s0 + $0x20] sm:$0xff]
    %v30 = vld [vmem:[%s0 + $0x28] sm:$0xff]
    %v31 = vld [vmem:[%s0 + $0x30] sm:$0xff]
    %v32 = vld [vmem:[%s0 + $0x38] sm:$0xff]
    %v33 = vld [vmem:[%s0 + $0x40] sm:$0xff]
    %v34 = vld [vmem:[%s0 + $0x48] sm:$0xff]
    %v35 = vld [vmem:[%s0 + $0x50] sm:$0xff]
    %v36 = vld [vmem:[%s0 + $0x58] sm:$0xff]
    %v37 = vld [vmem:[%s0 + $0x60] sm:$0xff]
    %v38 = vld [vmem:[%s0 + $0x68] sm:$0xff]
    %v39 = vld [vmem:[%s0 + $0x70] sm:$0xff]
    %v40 = vld [vmem:[%s0 + $0x78] sm:$0xff]
    %v41 = vpack.c.bf16 %v33, %v25
    %v42 = vpack.c.bf16 %v34, %v26
    %v43 = vpack.c.bf16 %v35, %v27
    %v44 = vpack.c.bf16 %v36, %v28
    %v45 = vpack.c.bf16 %v37, %v29
    %v46 = vpack.c.bf16 %v38, %v30
    %v47 = vpack.c.bf16 %v39, %v31
    %v48 = vpack.c.bf16 %v40, %v32
    %v49 = vld [vmem:[%s1] sm:$0xf]
    %v50 = vld [vmem:[%s1 + $0x4] sm:$0xf]
    %v51 = vld [vmem:[%s1 + $0x8] sm:$0xf]
    %v52 = vld [vmem:[%s1 + $0xc] sm:$0xf]
    %v53 = vld [vmem:[%s1 + $0x10] sm:$0xf]
    %v54 = vld [vmem:[%s1 + $0x14] sm:$0xf]
    %v55 = vld [vmem:[%s1 + $0x18] sm:$0xf]
    %v56 = vld [vmem:[%s1 + $0x1c] sm:$0xf]
    %v57 = vld [vmem:[%s1 + $0x20] sm:$0xf]
    %v58 = vld [vmem:[%s1 + $0x24] sm:$0xf]
    %v59 = vld [vmem:[%s1 + $0x28] sm:$0xf]
    %v60 = vld [vmem:[%s1 + $0x2c] sm:$0xf]
    %v61 = vld [vmem:[%s1 + $0x30] sm:$0xf]
    %v62 = vld [vmem:[%s1 + $0x34] sm:$0xf]
    %v63 = vld [vmem:[%s1 + $0x38] sm:$0xf]
    %v64 = vld [vmem:[%s1 + $0x3c] sm:$0xf]
    %v65 = vld [vmem:[%s1 + $0x40] sm:$0xf]
    %v66 = vld [vmem:[%s1 + $0x44] sm:$0xf]
    %v67 = vld [vmem:[%s1 + $0x48] sm:$0xf]
    %v68 = vld [vmem:[%s1 + $0x4c] sm:$0xf]
    %v69 = vld [vmem:[%s1 + $0x50] sm:$0xf]
    %v70 = vld [vmem:[%s1 + $0x54] sm:$0xf]
    %v71 = vld [vmem:[%s1 + $0x58] sm:$0xf]
    %v72 = vld [vmem:[%s1 + $0x5c] sm:$0xf]
    %v73 = vld [vmem:[%s1 + $0x60] sm:$0xf]
    %v74 = vld [vmem:[%s1 + $0x64] sm:$0xf]
    %v75 = vld [vmem:[%s1 + $0x68] sm:$0xf]
    %v76 = vld [vmem:[%s1 + $0x6c] sm:$0xf]
    %v77 = vld [vmem:[%s1 + $0x70] sm:$0xf]
    %v78 = vld [vmem:[%s1 + $0x74] sm:$0xf]
    %v79 = vld [vmem:[%s1 + $0x78] sm:$0xf]
    %v80 = vld [vmem:[%s1 + $0x7c] sm:$0xf]
    %v81 = vld [vmem:[%s1 + $0x80] sm:$0xf]
    %v82 = vld [vmem:[%s1 + $0x84] sm:$0xf]
    %v83 = vld [vmem:[%s1 + $0x88] sm:$0xf]
    %v84 = vld [vmem:[%s1 + $0x8c] sm:$0xf]
    %v85 = vld [vmem:[%s1 + $0x90] sm:$0xf]
    %v86 = vld [vmem:[%s1 + $0x94] sm:$0xf]
    %v87 = vld [vmem:[%s1 + $0x98] sm:$0xf]
    %v88 = vld [vmem:[%s1 + $0x9c] sm:$0xf]
    %v89 = vld [vmem:[%s1 + $0xa0] sm:$0xf]
    %v90 = vld [vmem:[%s1 + $0xa4] sm:$0xf]
    %v91 = vld [vmem:[%s1 + $0xa8] sm:$0xf]
    %v92 = vld [vmem:[%s1 + $0xac] sm:$0xf]
    %v93 = vld [vmem:[%s1 + $0xb0] sm:$0xf]
    %v94 = vld [vmem:[%s1 + $0xb4] sm:$0xf]
    %v95 = vld [vmem:[%s1 + $0xb8] sm:$0xf]
    %v96 = vld [vmem:[%s1 + $0xbc] sm:$0xf]
    %v97 = vld [vmem:[%s1 + $0xc0] sm:$0xf]
    %v98 = vld [vmem:[%s1 + $0xc4] sm:$0xf]
    %v99 = vld [vmem:[%s1 + $0xc8] sm:$0xf]
    %v100 = vld [vmem:[%s1 + $0xcc] sm:$0xf]
    %v101 = vld [vmem:[%s1 + $0xd0] sm:$0xf]
    %v102 = vld [vmem:[%s1 + $0xd4] sm:$0xf]
    %v103 = vld [vmem:[%s1 + $0xd8] sm:$0xf]
    %v104 = vld [vmem:[%s1 + $0xdc] sm:$0xf]
    %v105 = vld [vmem:[%s1 + $0xe0] sm:$0xf]
    %v106 = vld [vmem:[%s1 + $0xe4] sm:$0xf]
    %v107 = vld [vmem:[%s1 + $0xe8] sm:$0xf]
    %v108 = vld [vmem:[%s1 + $0xec] sm:$0xf]
    %v109 = vld [vmem:[%s1 + $0xf0] sm:$0xf]
    %v110 = vld [vmem:[%s1 + $0xf4] sm:$0xf]
    %v111 = vld [vmem:[%s1 + $0xf8] sm:$0xf]
    %v112 = vld [vmem:[%s1 + $0xfc] sm:$0xf]
    %v113 = vld [vmem:[%s1 + $0x100] sm:$0xf]
    %v114 = vld [vmem:[%s1 + $0x104] sm:$0xf]
    %v115 = vld [vmem:[%s1 + $0x108] sm:$0xf]
    %v116 = vld [vmem:[%s1 + $0x10c] sm:$0xf]
    %v117 = vld [vmem:[%s1 + $0x110] sm:$0xf]
    %v118 = vld [vmem:[%s1 + $0x114] sm:$0xf]
    %v119 = vld [vmem:[%s1 + $0x118] sm:$0xf]
    %v120 = vld [vmem:[%s1 + $0x11c] sm:$0xf]
    %v121 = vld [vmem:[%s1 + $0x120] sm:$0xf]
    %v122 = vld [vmem:[%s1 + $0x124] sm:$0xf]
    %v123 = vld [vmem:[%s1 + $0x128] sm:$0xf]
    %v124 = vld [vmem:[%s1 + $0x12c] sm:$0xf]
    %v125 = vld [vmem:[%s1 + $0x130] sm:$0xf]
    %v126 = vld [vmem:[%s1 + $0x134] sm:$0xf]
    %v127 = vld [vmem:[%s1 + $0x138] sm:$0xf]
    %v128 = vld [vmem:[%s1 + $0x13c] sm:$0xf]
    %v129 = vld [vmem:[%s1 + $0x140] sm:$0xf]
    %v130 = vld [vmem:[%s1 + $0x144] sm:$0xf]
    %v131 = vld [vmem:[%s1 + $0x148] sm:$0xf]
    %v132 = vld [vmem:[%s1 + $0x14c] sm:$0xf]
    %v133 = vld [vmem:[%s1 + $0x150] sm:$0xf]
    %v134 = vld [vmem:[%s1 + $0x154] sm:$0xf]
    %v135 = vld [vmem:[%s1 + $0x158] sm:$0xf]
    %v136 = vld [vmem:[%s1 + $0x15c] sm:$0xf]
    %v137 = vld [vmem:[%s1 + $0x160] sm:$0xf]
    %v138 = vld [vmem:[%s1 + $0x164] sm:$0xf]
    %v139 = vld [vmem:[%s1 + $0x168] sm:$0xf]
    %v140 = vld [vmem:[%s1 + $0x16c] sm:$0xf]
    %v141 = vld [vmem:[%s1 + $0x170] sm:$0xf]
    %v142 = vld [vmem:[%s1 + $0x174] sm:$0xf]
    %v143 = vld [vmem:[%s1 + $0x178] sm:$0xf]
    %v144 = vld [vmem:[%s1 + $0x17c] sm:$0xf]
    %v145 = vld [vmem:[%s1 + $0x180] sm:$0xf]
    %v146 = vld [vmem:[%s1 + $0x184] sm:$0xf]
    %v147 = vld [vmem:[%s1 + $0x188] sm:$0xf]
    %v148 = vld [vmem:[%s1 + $0x18c] sm:$0xf]
    %v149 = vld [vmem:[%s1 + $0x190] sm:$0xf]
    %v150 = vld [vmem:[%s1 + $0x194] sm:$0xf]
    %v151 = vld [vmem:[%s1 + $0x198] sm:$0xf]
    %v152 = vld [vmem:[%s1 + $0x19c] sm:$0xf]
    %v153 = vld [vmem:[%s1 + $0x1a0] sm:$0xf]
    %v154 = vld [vmem:[%s1 + $0x1a4] sm:$0xf]
    %v155 = vld [vmem:[%s1 + $0x1a8] sm:$0xf]
    %v156 = vld [vmem:[%s1 + $0x1ac] sm:$0xf]
    %v157 = vld [vmem:[%s1 + $0x1b0] sm:$0xf]
    %v158 = vld [vmem:[%s1 + $0x1b4] sm:$0xf]
    %v159 = vld [vmem:[%s1 + $0x1b8] sm:$0xf]
    %v160 = vld [vmem:[%s1 + $0x1bc] sm:$0xf]
    %v161 = vld [vmem:[%s1 + $0x1c0] sm:$0xf]
    %v162 = vld [vmem:[%s1 + $0x1c4] sm:$0xf]
    %v163 = vld [vmem:[%s1 + $0x1c8] sm:$0xf]
    %v164 = vld [vmem:[%s1 + $0x1cc] sm:$0xf]
    %v165 = vld [vmem:[%s1 + $0x1d0] sm:$0xf]
    %v166 = vld [vmem:[%s1 + $0x1d4] sm:$0xf]
    %v167 = vld [vmem:[%s1 + $0x1d8] sm:$0xf]
    %v168 = vld [vmem:[%s1 + $0x1dc] sm:$0xf]
    %v169 = vld [vmem:[%s1 + $0x1e0] sm:$0xf]
    %v170 = vld [vmem:[%s1 + $0x1e4] sm:$0xf]
    %v171 = vld [vmem:[%s1 + $0x1e8] sm:$0xf]
    %v172 = vld [vmem:[%s1 + $0x1ec] sm:$0xf]
    %v173 = vld [vmem:[%s1 + $0x1f0] sm:$0xf]
    %v174 = vld [vmem:[%s1 + $0x1f4] sm:$0xf]
    %v175 = vld [vmem:[%s1 + $0x1f8] sm:$0xf]
    %v176 = vld [vmem:[%s1 + $0x1fc] sm:$0xf]
    %v305 = vunpack.c.l.b16 %v49
    %v306 = vunpack.c.l.b16 %v50
    %v307 = vunpack.c.l.b16 %v51
    %v308 = vunpack.c.l.b16 %v52
    %v309 = vunpack.c.l.b16 %v53
    %v310 = vunpack.c.l.b16 %v54
    %v311 = vunpack.c.l.b16 %v55
    %v312 = vunpack.c.l.b16 %v56
    %v313 = vunpack.c.l.b16 %v57
    %v314 = vunpack.c.l.b16 %v58
    %v315 = vunpack.c.l.b16 %v59
    %v316 = vunpack.c.l.b16 %v60
    %v317 = vunpack.c.l.b16 %v61
    %v318 = vunpack.c.l.b16 %v62
    %v319 = vunpack.c.l.b16 %v63
    %v320 = vunpack.c.l.b16 %v64
    %v321 = vunpack.c.l.b16 %v65
    %v322 = vunpack.c.l.b16 %v66
    %v323 = vunpack.c.l.b16 %v67
    %v324 = vunpack.c.l.b16 %v68
    %v325 = vunpack.c.l.b16 %v69
    %v326 = vunpack.c.l.b16 %v70
    %v327 = vunpack.c.l.b16 %v71
    %v328 = vunpack.c.l.b16 %v72
    %v329 = vunpack.c.l.b16 %v73
    %v330 = vunpack.c.l.b16 %v74
    %v331 = vunpack.c.l.b16 %v75
    %v332 = vunpack.c.l.b16 %v76
    %v333 = vunpack.c.l.b16 %v77
    %v334 = vunpack.c.l.b16 %v78
    %v335 = vunpack.c.l.b16 %v79
    %v336 = vunpack.c.l.b16 %v80
    %v337 = vunpack.c.l.b16 %v81
    %v338 = vunpack.c.l.b16 %v82
    %v339 = vunpack.c.l.b16 %v83
    %v340 = vunpack.c.l.b16 %v84
    %v341 = vunpack.c.l.b16 %v85
    %v342 = vunpack.c.l.b16 %v86
    %v343 = vunpack.c.l.b16 %v87
    %v344 = vunpack.c.l.b16 %v88
    %v345 = vunpack.c.l.b16 %v89
    %v346 = vunpack.c.l.b16 %v90
    %v347 = vunpack.c.l.b16 %v91
    %v348 = vunpack.c.l.b16 %v92
    %v349 = vunpack.c.l.b16 %v93
    %v350 = vunpack.c.l.b16 %v94
    %v351 = vunpack.c.l.b16 %v95
    %v352 = vunpack.c.l.b16 %v96
    %v353 = vunpack.c.l.b16 %v97
    %v354 = vunpack.c.l.b16 %v98
    %v355 = vunpack.c.l.b16 %v99
    %v356 = vunpack.c.l.b16 %v100
    %v357 = vunpack.c.l.b16 %v101
    %v358 = vunpack.c.l.b16 %v102
    %v359 = vunpack.c.l.b16 %v103
    %v360 = vunpack.c.l.b16 %v104
    %v361 = vunpack.c.l.b16 %v105
    %v362 = vunpack.c.l.b16 %v106
    %v363 = vunpack.c.l.b16 %v107
    %v364 = vunpack.c.l.b16 %v108
    %v365 = vunpack.c.l.b16 %v109
    %v366 = vunpack.c.l.b16 %v110
    %v367 = vunpack.c.l.b16 %v111
    %v368 = vunpack.c.l.b16 %v112
    %v369 = vunpack.c.l.b16 %v113
    %v370 = vunpack.c.l.b16 %v114
    %v371 = vunpack.c.l.b16 %v115
    %v372 = vunpack.c.l.b16 %v116
    %v373 = vunpack.c.l.b16 %v117
    %v374 = vunpack.c.l.b16 %v118
    %v375 = vunpack.c.l.b16 %v119
    %v376 = vunpack.c.l.b16 %v120
    %v377 = vunpack.c.l.b16 %v121
    %v378 = vunpack.c.l.b16 %v122
    %v379 = vunpack.c.l.b16 %v123
    %v380 = vunpack.c.l.b16 %v124
    %v381 = vunpack.c.l.b16 %v125
    %v382 = vunpack.c.l.b16 %v126
    %v383 = vunpack.c.l.b16 %v127
    %v384 = vunpack.c.l.b16 %v128
    %v385 = vunpack.c.l.b16 %v129
    %v386 = vunpack.c.l.b16 %v130
    %v387 = vunpack.c.l.b16 %v131
    %v388 = vunpack.c.l.b16 %v132
    %v389 = vunpack.c.l.b16 %v133
    %v390 = vunpack.c.l.b16 %v134
    %v391 = vunpack.c.l.b16 %v135
    %v392 = vunpack.c.l.b16 %v136
    %v393 = vunpack.c.l.b16 %v137
    %v394 = vunpack.c.l.b16 %v138
    %v395 = vunpack.c.l.b16 %v139
    %v396 = vunpack.c.l.b16 %v140
    %v397 = vunpack.c.l.b16 %v141
    %v398 = vunpack.c.l.b16 %v142
    %v399 = vunpack.c.l.b16 %v143
    %v400 = vunpack.c.l.b16 %v144
    %v401 = vunpack.c.l.b16 %v145
    %v402 = vunpack.c.l.b16 %v146
    %v403 = vunpack.c.l.b16 %v147
    %v404 = vunpack.c.l.b16 %v148
    %v405 = vunpack.c.l.b16 %v149
    %v406 = vunpack.c.l.b16 %v150
    %v407 = vunpack.c.l.b16 %v151
    %v408 = vunpack.c.l.b16 %v152
    %v409 = vunpack.c.l.b16 %v153
    %v410 = vunpack.c.l.b16 %v154
    %v411 = vunpack.c.l.b16 %v155
    %v412 = vunpack.c.l.b16 %v156
    %v413 = vunpack.c.l.b16 %v157
    %v414 = vunpack.c.l.b16 %v158
    %v415 = vunpack.c.l.b16 %v159
    %v416 = vunpack.c.l.b16 %v160
    %v417 = vunpack.c.l.b16 %v161
    %v418 = vunpack.c.l.b16 %v162
    %v419 = vunpack.c.l.b16 %v163
    %v420 = vunpack.c.l.b16 %v164
    %v421 = vunpack.c.l.b16 %v165
    %v422 = vunpack.c.l.b16 %v166
    %v423 = vunpack.c.l.b16 %v167
    %v424 = vunpack.c.l.b16 %v168
    %v425 = vunpack.c.l.b16 %v169
    %v426 = vunpack.c.l.b16 %v170
    %v427 = vunpack.c.l.b16 %v171
    %v428 = vunpack.c.l.b16 %v172
    %v429 = vunpack.c.l.b16 %v173
    %v430 = vunpack.c.l.b16 %v174
    %v431 = vunpack.c.l.b16 %v175
    %v432 = vunpack.c.l.b16 %v176
    %v433 = vpack.c.b16 %v306, %v305
    %v434 = vpack.c.b16 %v308, %v307
    %v435 = vpack.c.b16 %v310, %v309
    %v436 = vpack.c.b16 %v312, %v311
    %v437 = vpack.c.b16 %v314, %v313
    %v438 = vpack.c.b16 %v316, %v315
    %v439 = vpack.c.b16 %v318, %v317
    %v440 = vpack.c.b16 %v320, %v319
    %v441 = vpack.c.b16 %v322, %v321
    %v442 = vpack.c.b16 %v324, %v323
    %v443 = vpack.c.b16 %v326, %v325
    %v444 = vpack.c.b16 %v328, %v327
    %v445 = vpack.c.b16 %v330, %v329
    %v446 = vpack.c.b16 %v332, %v331
    %v447 = vpack.c.b16 %v334, %v333
    %v448 = vpack.c.b16 %v336, %v335
    %v449 = vpack.c.b16 %v338, %v337
    %v450 = vpack.c.b16 %v340, %v339
    %v451 = vpack.c.b16 %v342, %v341
    %v452 = vpack.c.b16 %v344, %v343
    %v453 = vpack.c.b16 %v346, %v345
    %v454 = vpack.c.b16 %v348, %v347
    %v455 = vpack.c.b16 %v350, %v349
    %v456 = vpack.c.b16 %v352, %v351
    %v457 = vpack.c.b16 %v354, %v353
    %v458 = vpack.c.b16 %v356, %v355
    %v459 = vpack.c.b16 %v358, %v357
    %v460 = vpack.c.b16 %v360, %v359
    %v461 = vpack.c.b16 %v362, %v361
    %v462 = vpack.c.b16 %v364, %v363
    %v463 = vpack.c.b16 %v366, %v365
    %v464 = vpack.c.b16 %v368, %v367
    %v465 = vpack.c.b16 %v370, %v369
    %v466 = vpack.c.b16 %v372, %v371
    %v467 = vpack.c.b16 %v374, %v373
    %v468 = vpack.c.b16 %v376, %v375
    %v469 = vpack.c.b16 %v378, %v377
    %v470 = vpack.c.b16 %v380, %v379
    %v471 = vpack.c.b16 %v382, %v381
    %v472 = vpack.c.b16 %v384, %v383
    %v473 = vpack.c.b16 %v386, %v385
    %v474 = vpack.c.b16 %v388, %v387
    %v475 = vpack.c.b16 %v390, %v389
    %v476 = vpack.c.b16 %v392, %v391
    %v477 = vpack.c.b16 %v394, %v393
    %v478 = vpack.c.b16 %v396, %v395
    %v479 = vpack.c.b16 %v398, %v397
    %v480 = vpack.c.b16 %v400, %v399
    %v481 = vpack.c.b16 %v402, %v401
    %v482 = vpack.c.b16 %v404, %v403
    %v483 = vpack.c.b16 %v406, %v405
    %v484 = vpack.c.b16 %v408, %v407
    %v485 = vpack.c.b16 %v410, %v409
    %v486 = vpack.c.b16 %v412, %v411
    %v487 = vpack.c.b16 %v414, %v413
    %v488 = vpack.c.b16 %v416, %v415
    %v489 = vpack.c.b16 %v418, %v417
    %v490 = vpack.c.b16 %v420, %v419
    %v491 = vpack.c.b16 %v422, %v421
    %v492 = vpack.c.b16 %v424, %v423
    %v493 = vpack.c.b16 %v426, %v425
    %v494 = vpack.c.b16 %v428, %v427
    %v495 = vpack.c.b16 %v430, %v429
    %v496 = vpack.c.b16 %v432, %v431
    %561 = vmatprep.subr.bf16.mxu0 0
    %562 = vmatpush1.bf16.msra.mxu0 %v433
    %563 = vmatprep.subr.bf16.mxu0 0
    %564 = vmatpush1.bf16.msra.mxu0 %v434
    %565 = vmatprep.subr.bf16.mxu0 0
    %566 = vmatpush1.bf16.msra.mxu0 %v435
    %567 = vmatprep.subr.bf16.mxu0 0
    %568 = vmatpush1.bf16.msra.mxu0 %v436
    %569 = vmatprep.subr.bf16.mxu0 0
    %570 = vmatpush1.bf16.msra.mxu0 %v437
    %571 = vmatprep.subr.bf16.mxu0 0
    %572 = vmatpush1.bf16.msra.mxu0 %v438
    %573 = vmatprep.subr.bf16.mxu0 0
    %574 = vmatpush1.bf16.msra.mxu0 %v439
    %575 = vmatprep.subr.bf16.mxu0 0
    %576 = vmatpush1.bf16.msra.mxu0 %v440
    %577 = vmatprep.subr.bf16.mxu0 0
    %578 = vmatpush1.bf16.msra.mxu0 %v441
    %579 = vmatprep.subr.bf16.mxu0 0
    %580 = vmatpush1.bf16.msra.mxu0 %v442
    %581 = vmatprep.subr.bf16.mxu0 0
    %582 = vmatpush1.bf16.msra.mxu0 %v443
    %583 = vmatprep.subr.bf16.mxu0 0
    %584 = vmatpush1.bf16.msra.mxu0 %v444
    %585 = vmatprep.subr.bf16.mxu0 0
    %586 = vmatpush1.bf16.msra.mxu0 %v445
    %587 = vmatprep.subr.bf16.mxu0 0
    %588 = vmatpush1.bf16.msra.mxu0 %v446
    %589 = vmatprep.subr.bf16.mxu0 0
    %590 = vmatpush1.bf16.msra.mxu0 %v447
    %591 = vmatprep.subr.bf16.mxu0 0
    %592 = vmatpush1.bf16.msra.mxu0 %v448
    %593 = vmatprep.mubr.bf16.mxu0 %v42
    %594 = vmatmul.mubr.bf16.gmra.mrb[0].mxu0 %v41
    %v595 = vpop.f32.mrb[0].mxu0
    %v596 = vadd.f32 0.0, %v595
    %v597 = vpop.f32.mrb[0].mxu0
    %v598 = vpop.f32.mrb[0].mxu0
    %v599 = vadd.f32 0.0, %v598
    %v600 = vpop.f32.mrb[0].mxu0
    %601 = vdwg.mxu0
    %602 = vmatprep.subr.bf16.mxu0 0
    %603 = vmatpush1.bf16.msra.mxu0 %v449
    %604 = vmatprep.subr.bf16.mxu0 0
    %605 = vmatpush1.bf16.msra.mxu0 %v450
    %606 = vmatprep.subr.bf16.mxu0 0
    %607 = vmatpush1.bf16.msra.mxu0 %v451
    %608 = vmatprep.subr.bf16.mxu0 0
    %609 = vmatpush1.bf16.msra.mxu0 %v452
    %610 = vmatprep.subr.bf16.mxu0 0
    %611 = vmatpush1.bf16.msra.mxu0 %v453
    %612 = vmatprep.subr.bf16.mxu0 0
    %613 = vmatpush1.bf16.msra.mxu0 %v454
    %614 = vmatprep.subr.bf16.mxu0 0
    %615 = vmatpush1.bf16.msra.mxu0 %v455
    %616 = vmatprep.subr.bf16.mxu0 0
    %617 = vmatpush1.bf16.msra.mxu0 %v456
    %618 = vmatprep.subr.bf16.mxu0 0
    %619 = vmatpush1.bf16.msra.mxu0 %v457
    %620 = vmatprep.subr.bf16.mxu0 0
    %621 = vmatpush1.bf16.msra.mxu0 %v458
    %622 = vmatprep.subr.bf16.mxu0 0
    %623 = vmatpush1.bf16.msra.mxu0 %v459
    %624 = vmatprep.subr.bf16.mxu0 0
    %625 = vmatpush1.bf16.msra.mxu0 %v460
    %626 = vmatprep.subr.bf16.mxu0 0
    %627 = vmatpush1.bf16.msra.mxu0 %v461
    %628 = vmatprep.subr.bf16.mxu0 0
    %629 = vmatpush1.bf16.msra.mxu0 %v462
    %630 = vmatprep.subr.bf16.mxu0 0
    %631 = vmatpush1.bf16.msra.mxu0 %v463
    %632 = vmatprep.subr.bf16.mxu0 0
    %633 = vmatpush1.bf16.msra.mxu0 %v464
    %634 = vmatprep.mubr.bf16.mxu0 %v44
    %635 = vmatmul.mubr.bf16.gmra.mrb[0].mxu0 %v43
    %v636 = vpop.f32.mrb[0].mxu0
    %v637 = vadd.f32 %v596, %v636
    %v638 = vpop.f32.mrb[0].mxu0
    %v639 = vpop.f32.mrb[0].mxu0
    %v640 = vadd.f32 %v599, %v639
    %v641 = vpop.f32.mrb[0].mxu0
    %642 = vdwg.mxu0
    %643 = vmatprep.subr.bf16.mxu0 0
    %644 = vmatpush1.bf16.msra.mxu0 %v465
    %645 = vmatprep.subr.bf16.mxu0 0
    %646 = vmatpush1.bf16.msra.mxu0 %v466
    %647 = vmatprep.subr.bf16.mxu0 0
    %648 = vmatpush1.bf16.msra.mxu0 %v467
    %649 = vmatprep.subr.bf16.mxu0 0
    %650 = vmatpush1.bf16.msra.mxu0 %v468
    %651 = vmatprep.subr.bf16.mxu0 0
    %652 = vmatpush1.bf16.msra.mxu0 %v469
    %653 = vmatprep.subr.bf16.mxu0 0
    %654 = vmatpush1.bf16.msra.mxu0 %v470
    %655 = vmatprep.subr.bf16.mxu0 0
    %656 = vmatpush1.bf16.msra.mxu0 %v471
    %657 = vmatprep.subr.bf16.mxu0 0
    %658 = vmatpush1.bf16.msra.mxu0 %v472
    %659 = vmatprep.subr.bf16.mxu0 0
    %660 = vmatpush1.bf16.msra.mxu0 %v473
    %661 = vmatprep.subr.bf16.mxu0 0
    %662 = vmatpush1.bf16.msra.mxu0 %v474
    %663 = vmatprep.subr.bf16.mxu0 0
    %664 = vmatpush1.bf16.msra.mxu0 %v475
    %665 = vmatprep.subr.bf16.mxu0 0
    %666 = vmatpush1.bf16.msra.mxu0 %v476
    %667 = vmatprep.subr.bf16.mxu0 0
    %668 = vmatpush1.bf16.msra.mxu0 %v477
    %669 = vmatprep.subr.bf16.mxu0 0
    %670 = vmatpush1.bf16.msra.mxu0 %v478
    %671 = vmatprep.subr.bf16.mxu0 0
    %672 = vmatpush1.bf16.msra.mxu0 %v479
    %673 = vmatprep.subr.bf16.mxu0 0
    %674 = vmatpush1.bf16.msra.mxu0 %v480
    %675 = vmatprep.mubr.bf16.mxu0 %v46
    %676 = vmatmul.mubr.bf16.gmra.mrb[0].mxu0 %v45
    %v677 = vpop.f32.mrb[0].mxu0
    %v678 = vadd.f32 %v637, %v677
    %v679 = vpop.f32.mrb[0].mxu0
    %v680 = vpop.f32.mrb[0].mxu0
    %v681 = vadd.f32 %v640, %v680
    %v682 = vpop.f32.mrb[0].mxu0
    %683 = vdwg.mxu0
    %684 = vmatprep.subr.bf16.mxu0 0
    %685 = vmatpush1.bf16.msra.mxu0 %v481
    %686 = vmatprep.subr.bf16.mxu0 0
    %687 = vmatpush1.bf16.msra.mxu0 %v482
    %688 = vmatprep.subr.bf16.mxu0 0
    %689 = vmatpush1.bf16.msra.mxu0 %v483
    %690 = vmatprep.subr.bf16.mxu0 0
    %691 = vmatpush1.bf16.msra.mxu0 %v484
    %692 = vmatprep.subr.bf16.mxu0 0
    %693 = vmatpush1.bf16.msra.mxu0 %v485
    %694 = vmatprep.subr.bf16.mxu0 0
    %695 = vmatpush1.bf16.msra.mxu0 %v486
    %696 = vmatprep.subr.bf16.mxu0 0
    %697 = vmatpush1.bf16.msra.mxu0 %v487
    %698 = vmatprep.subr.bf16.mxu0 0
    %699 = vmatpush1.bf16.msra.mxu0 %v488
    %700 = vmatprep.subr.bf16.mxu0 0
    %701 = vmatpush1.bf16.msra.mxu0 %v489
    %702 = vmatprep.subr.bf16.mxu0 0
    %703 = vmatpush1.bf16.msra.mxu0 %v490
    %704 = vmatprep.subr.bf16.mxu0 0
    %705 = vmatpush1.bf16.msra.mxu0 %v491
    %706 = vmatprep.subr.bf16.mxu0 0
    %707 = vmatpush1.bf16.msra.mxu0 %v492
    %708 = vmatprep.subr.bf16.mxu0 0
    %709 = vmatpush1.bf16.msra.mxu0 %v493
    %710 = vmatprep.subr.bf16.mxu0 0
    %711 = vmatpush1.bf16.msra.mxu0 %v494
    %712 = vmatprep.subr.bf16.mxu0 0
    %713 = vmatpush1.bf16.msra.mxu0 %v495
    %714 = vmatprep.subr.bf16.mxu0 0
    %715 = vmatpush1.bf16.msra.mxu0 %v496
    %716 = vmatprep.mubr.bf16.mxu0 %v48
    %717 = vmatmul.mubr.bf16.gmra.mrb[0].mxu0 %v47
    %v718 = vpop.f32.mrb[0].mxu0
    %v719 = vadd.f32 %v678, %v718
    %v720 = vpop.f32.mrb[0].mxu0
    %v721 = vpop.f32.mrb[0].mxu0
    %v722 = vadd.f32 %v681, %v721
    %v723 = vpop.f32.mrb[0].mxu0
    %724 = vdwg.mxu0
    %v725 = vadd.f32 %v23, %v719
    %v726 = vadd.f32 %v24, %v722
    %vm727 = vcmask 523264
    %728 = vst.msk [vmem:[#allocation2] sm:$0xff] %vm727, %v725
    %729 = vst.msk [vmem:[#allocation2 + $0x8] sm:$0xff] %vm727, %v726
    // Predicated region
    $region18: #{tpu_custom_call.1} parent=1 // pred_check
      %p730 = pneg %p16
    $region19: #{tpu_custom_call.1} parent=1 // pred_check_branch
      %732 = sbr.rel (%p730) target = $region21
    $region20: #{tpu_custom_call.1} parent=1 // pred_region
      %v733 = vld [vmem:[#allocation2] sm:$0xff]
      %v734 = vld [vmem:[#allocation2 + $0x8] sm:$0xff]
      %v735 = vld [vmem:[%s2] sm:$0x1]
      %v737 = vlaneseq
      %v738 = vshrl.u32 %v737, 7
      %v739 = vsub.s32 0, %v738
      %v740 = vrot.slane %v735, %v739
      %v742 = vadd.f32 %v733, %v740
      %v743 = vadd.f32 %v734, %v740
      %744 = vst.msk [vmem:[#allocation3] sm:$0xff] %vm727, %v742
      %745 = vst.msk [vmem:[#allocation3 + $0x8] sm:$0xff] %vm727, %v743
    $region21: #{tpu_custom_call.1} parent=1 // pred_fallthru
      _
    // Predicated region
    $region22: #{tpu_custom_call.1} parent=1 // pred_check
      _
    $region23: #{tpu_custom_call.1} parent=1 // pred_check_branch
      %747 = sbr.rel (0) target = $region25
    $region24: #{tpu_custom_call.1} parent=1 // pred_region
      %s749 = ssub.s32 256, 256
      %750 = vsyncadd [#allocation4], %s749
      %s751 = sshll.u32 [#allocation3], 4
      %s752 = int_to_ptr.vmem [resolvable:$true] %s751
      %757 = dma.vmem_to_hbm [thread:$0]  %s752, 256, %s3, [#allocation4], 128, 128, 8
    $region25: #{tpu_custom_call.1} parent=1 // pred_fallthru
      _
    // Predicated region
    $region26: #{tpu_custom_call.1} parent=1 // pred_check
      _
    $region27: #{tpu_custom_call.1} parent=1 // pred_check_branch
      %759 = sbr.rel (0) target = $region29
    $region28: #{tpu_custom_call.1} parent=1 // pred_region
      %760 = dma.done [#allocation4], 256
    $region29: #{tpu_custom_call.1} parent=1 // pred_fallthru
      _
    %761 = vsyncpa [#allocation4], 1

</llo_original>
